<compile_context>
chip_gen: v7x
topology: tpu7x:2x2x1
jax: 0.10.0
libtpu: 0.0.40
codegen_flags: <defaults>
</compile_context>

<pallas_src>
import functools

import jax
import jax.numpy as jnp
from jax.experimental import pallas as pl
from jax.experimental.pallas import tpu as pltpu

_LANES = 128


def _sublane_granule(dtype):
    """Minimum sublane multiple for a dtype: 8 (f32), 16 (bf16), 32 (int8)."""
    return max(8, 32 // jnp.dtype(dtype).itemsize)


def _device_kind():
    try:
        return jax.devices()[0].device_kind.lower()
    except Exception:  # pragma: no cover - conservative fallback
        return ""


def _choose_row_tile(rows, granule, row_tile_max, ncores):
    """Largest granule-multiple <= row_tile_max that divides rows exactly.

    Prefers a tile whose block count also splits evenly across `ncores`
    (no duplicate-block DMA), as long as that does not shrink the tile >2x.
    `rows` is always a multiple of `granule` by construction.
    """
    cap = max(granule, min(row_tile_max, rows))
    cap -= cap % granule
    best, best_even = None, None
    rt = cap
    while rt >= granule:
        if rows % rt == 0:
            if best is None:
                best = rt
            if (rows // rt) % ncores == 0:
                best_even = rt
                break
        rt -= granule
    if best is None:
        best = granule
    if best_even is not None and best_even * 2 >= best:
        return best_even
    return best


def _mse_partial_kernel(x_ref, t_ref, part_ref, *, blocks_per_core, num_blocks,
                        acc_sub, gate_duplicates):
    c = pl.program_id(0)   # TensorCore shard (CORE_PARALLEL on v7x, size 1 otherwise)
    i = pl.program_id(1)   # reduction step within the shard ("arbitrary")

    @pl.when(i == 0)
    def _():
        part_ref[...] = jnp.zeros_like(part_ref)

    def _accumulate():
        d = x_ref[...].astype(jnp.float32) - t_ref[...].astype(jnp.float32)
        sq = d * d
        # Fold (row_tile, 128) onto the resident (1, acc_sub, 128) accumulator
        # with pure VPU adds; the single cross-lane reduce happens once in the
        # wrapper on a few KiB.
        part_ref[...] += sq.reshape(-1, acc_sub, _LANES).sum(axis=0)[None]

    if gate_duplicates:
        # Uneven core split: the last slot of the last core re-reads a clamped
        # duplicate block; skip its whole-block contribution (scalar compare,
        # no per-element masking anywhere in the kernel).
        b = c * blocks_per_core + i
        pl.when(b < num_blocks)(_accumulate)
    else:
        _accumulate()


def _sq_diff_sum_pallas(x2d, t2d, *, granule, row_tile_max, ncores,
                        core_parallel, vmem_limit_bytes):
    """Sum of squared differences over a (rows, 128) slab; rows % granule == 0."""
    rows = x2d.shape[0]
    row_tile = _choose_row_tile(rows, granule, row_tile_max, max(1, ncores))
    num_blocks = rows // row_tile
    ncores = max(1, min(ncores, num_blocks))
    blocks_per_core = -(-num_blocks // ncores)          # ceil
    gate_duplicates = ncores * blocks_per_core != num_blocks

    # Accumulator width: up to 64 sublanes to break the dependent add chain.
    acc_sub = next(a for a in (64, 32, 16, 8) if row_tile % a == 0)

    def in_map(c, i):
        b = c * blocks_per_core + i
        if gate_duplicates:
            # Clamp so the DMA stays in bounds; the duplicate is gated in-kernel.
            b = jnp.minimum(b, num_blocks - 1)
        return (b, 0)

    kernel = functools.partial(
        _mse_partial_kernel,
        blocks_per_core=blocks_per_core,
        num_blocks=num_blocks,
        acc_sub=acc_sub,
        gate_duplicates=gate_duplicates,
    )

    if ncores > 1 and core_parallel:
        # Guarantee the two v7x TensorCores each stream half the data.
        dims = (getattr(pltpu, "CORE_PARALLEL", pltpu.PARALLEL), pltpu.ARBITRARY)
    else:
        dims = ("arbitrary", "arbitrary")

    bytes_in = x2d.size * x2d.dtype.itemsize + t2d.size * t2d.dtype.itemsize
    partials = pl.pallas_call(
        kernel,
        out_shape=jax.ShapeDtypeStruct((ncores, acc_sub, _LANES), jnp.float32),
        grid_spec=pltpu.PrefetchScalarGridSpec(
            num_scalar_prefetch=0,
            grid=(ncores, blocks_per_core),
            in_specs=[
                pl.BlockSpec((row_tile, _LANES), in_map),
                pl.BlockSpec((row_tile, _LANES), in_map),
            ],
            out_specs=pl.BlockSpec((1, acc_sub, _LANES), lambda c, i: (c, 0, 0)),
        ),
        compiler_params=pltpu.CompilerParams(
            dimension_semantics=dims,
            vmem_limit_bytes=vmem_limit_bytes,
        ),
        cost_estimate=pl.CostEstimate(
            flops=3 * x2d.size,
            transcendentals=0,
            bytes_accessed=bytes_in + ncores * acc_sub * _LANES * 4,
        ),
    )(x2d, t2d)

    # Tiny cross-lane reduce (<= 2 * 64 * 128 f32) in XLA.
    return jnp.sum(partials)


def content_loss_forward(x, target, *, row_tile_max=None, ncores=None,
                         vmem_limit_bytes=None):
    """Returns (input_passthrough, mse_loss) matching Content_Loss.forward."""
    assert x.shape == target.shape, "mse_loss without broadcasting: shapes must match"

    kind = _device_kind()
    is_v7 = ("v7" in kind) or ("tpu7" in kind)   # 2 TensorCores / chip
    if ncores is None:
        ncores = 2 if is_v7 else 1               # 1-TC chips: no core axis waste
    if vmem_limit_bytes is None:
        vmem_limit_bytes = (48 if is_v7 else 32) * 1024 * 1024

    granule = max(_sublane_granule(x.dtype), _sublane_granule(target.dtype))
    chunk = granule * _LANES
    itemsize = max(x.dtype.itemsize, target.dtype.itemsize)
    if row_tile_max is None:
        # Per-input block budget: 8 MiB on v7x (3.2 TB/s -> amortize step
        # overhead), 4 MiB on v5e/v6e.  Double-buffered x 2 inputs stays well
        # under the vmem limit above.
        block_target = (8 if is_v7 else 4) * 1024 * 1024
        row_tile_max = max(granule, block_target // (_LANES * itemsize))

    n = int(x.size)
    n_main = (n // chunk) * chunk

    x_flat = x.reshape(-1)
    t_flat = target.reshape(-1)

    total = jnp.float32(0.0)
    if n_main > 0:
        x_main = x_flat[:n_main].reshape(-1, _LANES)
        t_main = t_flat[:n_main].reshape(-1, _LANES)
        total = total + _sq_diff_sum_pallas(
            x_main, t_main,
            granule=granule, row_tile_max=row_tile_max, ncores=ncores,
            core_parallel=is_v7, vmem_limit_bytes=vmem_limit_bytes)
    if n_main < n:
        # Ragged tail (< granule*128 elements): reduce in plain XLA instead of
        # materializing a padded copy of both full tensors.
        d = x_flat[n_main:].astype(jnp.float32) - t_flat[n_main:].astype(jnp.float32)
        total = total + jnp.sum(d * d)

    loss = total * jnp.float32(1.0 / n)
    # The module returns its input unchanged; the scalar loss is returned
    # explicitly instead of being stashed on `self.loss`.
    return x, loss


class ContentLoss:
    """Mirrors the PyTorch Content_Loss module interface."""

    def __init__(self, target):
        self.target = jax.lax.stop_gradient(target)
        self.loss = None

    def __call__(self, x):
        out, self.loss = content_loss_forward(x, self.target)
        return out


if __name__ == "__main__":
    key = jax.random.PRNGKey(0)
    k1, k2, k3, k4, k5, k6 = jax.random.split(key, 6)

    # Case 1: conv-feature-map-like NCHW input through the module wrapper.
    x = jax.random.normal(k1, (2, 4, 16, 16), dtype=jnp.float32)
    tgt = jax.random.normal(k2, (2, 4, 16, 16), dtype=jnp.float32)
    mod = ContentLoss(tgt)
    out = jax.block_until_ready(mod(x))
    loss = jax.block_until_ready(mod.loss)
    ref = jnp.mean((x - tgt) ** 2)
    assert jnp.allclose(loss, ref, rtol=1e-5, atol=1e-6), (loss, ref)
    assert jnp.array_equal(out, x)

    # Case 2: multi-block grid with an uneven core split -> exercises the
    # whole-block duplicate gate (3 blocks of 8 rows across 2 grid slots).
    x2 = jax.random.normal(k3, (2, 3, 16, 32), dtype=jnp.float32)
    t2 = jax.random.normal(k4, (2, 3, 16, 32), dtype=jnp.float32)
    _, loss2 = content_loss_forward(x2, t2, row_tile_max=8, ncores=2)
    loss2 = jax.block_until_ready(loss2)
    ref2 = jnp.mean((x2 - t2) ** 2)
    assert jnp.allclose(loss2, ref2, rtol=1e-5, atol=1e-6), (loss2, ref2)

    # Case 3: ragged element count -> aligned prefix through the kernel plus an
    # XLA tail (2700 elements = 2 aligned chunks + 652-element tail).
    x3 = jax.random.normal(k5, (1, 3, 30, 30), dtype=jnp.float32)
    t3 = jax.random.normal(k6, (1, 3, 30, 30), dtype=jnp.float32)
    _, loss3 = content_loss_forward(x3, t3)
    loss3 = jax.block_until_ready(loss3)
    ref3 = jnp.mean((x3 - t3) ** 2)
    assert jnp.allclose(loss3, ref3, rtol=1e-5, atol=1e-6), (loss3, ref3)

    # Case 4: tiny ragged input, everything lands in the XLA tail path.
    x4 = jax.random.normal(k1, (1, 3, 10, 13), dtype=jnp.float32)
    t4 = jax.random.normal(k2, (1, 3, 10, 13), dtype=jnp.float32)
    _, loss4 = content_loss_forward(x4, t4)
    loss4 = jax.block_until_ready(loss4)
    ref4 = jnp.mean((x4 - t4) ** 2)
    assert jnp.allclose(loss4, ref4, rtol=1e-5, atol=1e-6), (loss4, ref4)

    # Case 5: bf16 inputs -> dtype-aware 16-sublane granule, upcast in-kernel.
    x5 = jax.random.normal(k3, (2, 8, 32, 32), dtype=jnp.bfloat16)
    t5 = jax.random.normal(k4, (2, 8, 32, 32), dtype=jnp.bfloat16)
    out5, loss5 = content_loss_forward(x5, t5)
    loss5 = jax.block_until_ready(loss5)
    ref5 = jnp.mean((x5.astype(jnp.float32) - t5.astype(jnp.float32)) ** 2)
    assert jnp.allclose(loss5, ref5, rtol=1e-4, atol=1e-6), (loss5, ref5)
    assert jnp.array_equal(out5, x5)

    print("KERNEL_OK")
</pallas_src>

<mosaic_0001>
module attributes {stable_mosaic.version = 11 : i64} {
  func.func @_mse_partial_kernel(%arg0: i32, %arg1: i32, %arg2: memref<16x128xf32, #tpu.memory_space<vmem>>, %arg3: memref<16x128xf32, #tpu.memory_space<vmem>>, %arg4: memref<1x16x128xf32, #tpu.memory_space<vmem>>) attributes {dimension_semantics = [#tpu.dimension_semantics<arbitrary>, #tpu.dimension_semantics<arbitrary>], iteration_bounds = array<i64: 1, 1>, scalar_prefetch = 0 : i64, scratch_operands = 0 : i64, tpu.core_type = #tpu.core_type<tc>, window_params = [{transform_indices = @transform_0, window_bounds = array<i64: 16, 128>}, {transform_indices = @transform_1, window_bounds = array<i64: 16, 128>}, {transform_indices = @transform_2, window_bounds = array<i64: 1, 16, 128>}]} {
    %c0_i32 = arith.constant 0 : i32
    %0 = arith.cmpi eq, %arg1, %c0_i32 : i32
    %1 = arith.extui %0 : i1 to i32
    %c0_i32_0 = arith.constant 0 : i32
    %2 = arith.cmpi ne, %1, %c0_i32_0 : i32
    scf.if %2 {
      %cst_10 = arith.constant 0.000000e+00 : f32
      %13 = vector.broadcast %cst_10 : f32 to vector<1x16x128xf32>
      %c0_11 = arith.constant 0 : index
      %c0_12 = arith.constant 0 : index
      %c0_13 = arith.constant 0 : index
      %14 = vector.load %arg4[%c0_11, %c0_12, %c0_13] : memref<1x16x128xf32, #tpu.memory_space<vmem>>, vector<1x16x128xf32>
      tpu.vector_store %arg4[%c0_11, %c0_12, %c0_13], %13 {strides = array<i32>} : memref<1x16x128xf32, #tpu.memory_space<vmem>>, vector<1x16x128xf32>,
    } else {
    }
    %c0 = arith.constant 0 : index
    %c0_1 = arith.constant 0 : index
    %3 = vector.load %arg2[%c0, %c0_1] : memref<16x128xf32, #tpu.memory_space<vmem>>, vector<16x128xf32>
    %c0_2 = arith.constant 0 : index
    %c0_3 = arith.constant 0 : index
    %4 = vector.load %arg3[%c0_2, %c0_3] : memref<16x128xf32, #tpu.memory_space<vmem>>, vector<16x128xf32>
    %5 = arith.subf %3, %4 : vector<16x128xf32>
    %6 = arith.mulf %5, %5 : vector<16x128xf32>
    %c0_4 = arith.constant 0 : index
    %c0_5 = arith.constant 0 : index
    %c0_6 = arith.constant 0 : index
    %7 = vector.load %arg4[%c0_4, %c0_5, %c0_6] : memref<1x16x128xf32, #tpu.memory_space<vmem>>, vector<1x16x128xf32>
    %8 = vector.shape_cast %6 : vector<16x128xf32> to vector<1x16x128xf32>
    %cst = arith.constant dense<0.000000e+00> : vector<16x128xf32>
    %9 = vector.multi_reduction <add>, %8, %cst [0] : vector<1x16x128xf32> to vector<16x128xf32>
    %10 = vector.shape_cast %9 : vector<16x128xf32> to vector<1x16x128xf32>
    %11 = arith.addf %7, %10 : vector<1x16x128xf32>
    %c0_7 = arith.constant 0 : index
    %c0_8 = arith.constant 0 : index
    %c0_9 = arith.constant 0 : index
    %12 = vector.load %arg4[%c0_7, %c0_8, %c0_9] : memref<1x16x128xf32, #tpu.memory_space<vmem>>, vector<1x16x128xf32>
    tpu.vector_store %arg4[%c0_7, %c0_8, %c0_9], %11 {strides = array<i32>} : memref<1x16x128xf32, #tpu.memory_space<vmem>>, vector<1x16x128xf32>,
    return
  }
  func.func @transform_0(%arg0: i32, %arg1: i32) -> (i32, i32) {
    %c1_i32 = arith.constant 1 : i32
    %0 = arith.muli %arg0, %c1_i32 : i32
    %1 = arith.addi %0, %arg1 : i32
    %c0_i32 = arith.constant 0 : i32
    %c0_i32_0 = arith.constant 0 : i32
    return %1, %c0_i32 : i32, i32
  }
  func.func @transform_1(%arg0: i32, %arg1: i32) -> (i32, i32) {
    %c1_i32 = arith.constant 1 : i32
    %0 = arith.muli %arg0, %c1_i32 : i32
    %1 = arith.addi %0, %arg1 : i32
    %c0_i32 = arith.constant 0 : i32
    %c0_i32_0 = arith.constant 0 : i32
    return %1, %c0_i32 : i32, i32
  }
  func.func @transform_2(%arg0: i32, %arg1: i32) -> (i32, i32, i32) {
    %c0_i32 = arith.constant 0 : i32
    %c0_i32_0 = arith.constant 0 : i32
    %c0_i32_1 = arith.constant 0 : i32
    return %arg0, %c0_i32, %c0_i32_0 : i32, i32, i32
  }
}

</mosaic_0001>

<llo_original>
// kernel: tpu_custom_call.1
$region0: #{tpu_custom_call.1}
  #allocation0 [shape = 'u32[]', space=smem, size = 0x4, offset = 0x4, fixed_abs, tag = 'smem constant byte address 0x4 - core index']
  #allocation1 [shape = 'u32[144,128]{1,0:T(1,128)}', space=vmem, size = 0x12000, scoped, tag = 'internal scratch']
  %s0 = inlined_call_operand.hbm [shape: f32[16,128], index: 0, kind: input, shape index: {}]
  %s1 = inlined_call_operand.hbm [shape: f32[16,128], index: 1, kind: input, shape index: {}]
  %s2 = inlined_call_operand.hbm [shape: f32[1,16,128], index: 2, kind: output, shape index: {}]
  %s3 = sld [smem:[#allocation0]]
  $region30: #{tpu_custom_call.1} parent=0
    _
  %s5 = ssub.s32 1, %s3
  %s6 = scalar_select 0, %s5, %s3
  $region1: #{tpu_custom_call.1} parent=0
    #allocation2 [shape = 'u8[8192]{0}', space=vmem, size = 0x2000, scoped, tag = 'input window, operand 0, single buffered']
    #allocation3 [shape = 's32[1]{0}', space=sflag, size = 0x4, scoped, tag = 'scoped memory for tpu_custom_call.1']
    #allocation4 [shape = 's32[1]{0}', space=sflag, size = 0x4, scoped, tag = 'scoped memory for tpu_custom_call.1']
    #allocation5 [shape = 'u8[8192]{0}', space=vmem, size = 0x2000, scoped, tag = 'input window, operand 1, single buffered']
    #allocation6 [shape = 's32[1]{0}', space=sflag, size = 0x4, scoped, tag = 'scoped memory for tpu_custom_call.1']
    #allocation7 [shape = 'u8[8192]{0}', space=vmem, size = 0x2000, scoped, tag = 'output window, operand 0, single buffered']
    %7 = vsyncpa [#allocation3], 0
    %8 = vsyncpa [#allocation6], 0
    %9 = vsyncpa [#allocation4], 0
    // Predicated region
    $region2: #{tpu_custom_call.1} parent=1 // pred_check
      _
    $region3: #{tpu_custom_call.1} parent=1 // pred_check_branch
      %11 = sbr.rel (0) target = $region5
    $region4: #{tpu_custom_call.1} parent=1 // pred_region
      %s12 = sadd.s32 0, 0
      %s13 = smul.u32 2, %s12
      %s15 = ssub.s32 256, 256
      %16 = vsyncadd [#allocation3], %s15
      %s17 = smul.addr %s13, 128
      %s18 = scalar_lea.hbm %s0, %s17
      %s19 = sshll.u32 [#allocation2], 4
      %s20 = int_to_ptr.vmem [resolvable:$true] %s19
      %25 = dma.hbm_to_vmem [thread:$0]  %s18, 256, %s20, [#allocation3], 128, 128, 8
    $region5: #{tpu_custom_call.1} parent=1 // pred_fallthru
      _
    // Predicated region
    $region6: #{tpu_custom_call.1} parent=1 // pred_check
      _
    $region7: #{tpu_custom_call.1} parent=1 // pred_check_branch
      %27 = sbr.rel (0) target = $region9
    $region8: #{tpu_custom_call.1} parent=1 // pred_region
      %s28 = sadd.s32 0, 0
      %s29 = smul.u32 2, %s28
      %s31 = ssub.s32 256, 256
      %32 = vsyncadd [#allocation6], %s31
      %s33 = smul.addr %s29, 128
      %s34 = scalar_lea.hbm %s1, %s33
      %s35 = sshll.u32 [#allocation5], 4
      %s36 = int_to_ptr.vmem [resolvable:$true] %s35
      %41 = dma.hbm_to_vmem [thread:$0]  %s34, 256, %s36, [#allocation6], 128, 128, 8
    $region9: #{tpu_custom_call.1} parent=1 // pred_fallthru
      _
    // Predicated region
    $region10: #{tpu_custom_call.1} parent=1 // pred_check
      _
    $region11: #{tpu_custom_call.1} parent=1 // pred_check_branch
      %43 = sbr.rel (0) target = $region13
    $region12: #{tpu_custom_call.1} parent=1 // pred_region
      %44 = dma.done [#allocation3], 256
    $region13: #{tpu_custom_call.1} parent=1 // pred_fallthru
      _
    // Predicated region
    $region14: #{tpu_custom_call.1} parent=1 // pred_check
      _
    $region15: #{tpu_custom_call.1} parent=1 // pred_check_branch
      %46 = sbr.rel (0) target = $region17
    $region16: #{tpu_custom_call.1} parent=1 // pred_region
      %47 = dma.done [#allocation6], 256
    $region17: #{tpu_custom_call.1} parent=1 // pred_fallthru
      _
    %s48 = sadd.s32 0, 0
    %s49 = smul.u32 2, %s48
    %s50 = sadd.s32 0, 0
    %s51 = smul.u32 2, %s50
    %p52 = scmp.eq.s32.totalorder 0, 0
    // Predicated region
    $region18: #{tpu_custom_call.1} parent=1 // pred_check
      %p53 = pneg %p52
    $region19: #{tpu_custom_call.1} parent=1 // pred_check_branch
      %55 = sbr.rel (%p53) target = $region21
    $region20: #{tpu_custom_call.1} parent=1 // pred_region
      %56 = vst [vmem:[#allocation7] sm:$0xff] 0.0
      %57 = vst [vmem:[#allocation7 + $0x8] sm:$0xff] 0.0
    $region21: #{tpu_custom_call.1} parent=1 // pred_fallthru
      _
    %v58 = vld [vmem:[#allocation2] sm:$0xff]
    %v59 = vld [vmem:[#allocation2 + $0x8] sm:$0xff]
    %v60 = vld [vmem:[#allocation5] sm:$0xff]
    %v61 = vld [vmem:[#allocation5 + $0x8] sm:$0xff]
    %v62 = vsub.f32 %v58, %v60
    %v63 = vsub.f32 %v59, %v61
    %v64 = vmul.f32 %v62, %v62
    %v65 = vmul.f32 %v63, %v63
    %v66 = vld [vmem:[#allocation7] sm:$0xff]
    %v67 = vld [vmem:[#allocation7 + $0x8] sm:$0xff]
    %v68 = vadd.f32 %v64, 0.0
    %v69 = vadd.f32 %v65, 0.0
    %v70 = vadd.f32 %v66, %v68
    %v71 = vadd.f32 %v67, %v69
    %72 = vst [vmem:[#allocation7] sm:$0xff] %v70
    %73 = vst [vmem:[#allocation7 + $0x8] sm:$0xff] %v71
    // Predicated region
    $region22: #{tpu_custom_call.1} parent=1 // pred_check
      _
    $region23: #{tpu_custom_call.1} parent=1 // pred_check_branch
      %75 = sbr.rel (0) target = $region25
    $region24: #{tpu_custom_call.1} parent=1 // pred_region
      %s77 = ssub.s32 256, 256
      %78 = vsyncadd [#allocation4], %s77
      %s79 = sshll.u32 [#allocation7], 4
      %s80 = int_to_ptr.vmem [resolvable:$true] %s79
      %85 = dma.vmem_to_hbm [thread:$0]  %s80, 256, %s2, [#allocation4], 128, 128, 8
    $region25: #{tpu_custom_call.1} parent=1 // pred_fallthru
      _
    // Predicated region
    $region26: #{tpu_custom_call.1} parent=1 // pred_check
      _
    $region27: #{tpu_custom_call.1} parent=1 // pred_check_branch
      %87 = sbr.rel (0) target = $region29
    $region28: #{tpu_custom_call.1} parent=1 // pred_region
      %88 = dma.done [#allocation4], 256
    $region29: #{tpu_custom_call.1} parent=1 // pred_fallthru
      _
    %89 = vsyncpa [#allocation3], 1
    %90 = vsyncpa [#allocation6], 1
    %91 = vsyncpa [#allocation4], 1

</llo_original>
